<compile_context>
chip_gen: v7x
topology: tpu7x:2x2x1
jax: 0.10.0
libtpu: 0.0.40
codegen_flags: <defaults>
</compile_context>

<pallas_src>
import functools

import jax
import jax.numpy as jnp
from jax import lax
from jax.experimental import pallas as pl
from jax.experimental.pallas import tpu as pltpu

STATE_DIM = 5
ACTION_DIM = 1
HIDDEN = 64


def _mlp_kernel(x_ref, w1, b1, w2, b2, w3, b3, w4, b4, w5c, b5, o_ref):
    """Fused 5-layer MLP, batch on lanes.

    x_ref  : (tb, STATE_DIM)  raw input tile (no wrapper transpose)
    w1..w4 : (out, in)        PyTorch layout; bf16 on the perf path, f32 for validation
    b1..b4 : (out, 1)         f32 column biases, broadcast over the lane (batch) axis
    w5c    : (HIDDEN, 1)      final weight as an f32 column -> VPU mul + sublane reduce
    b5     : (1, 1)           f32
    o_ref  : (1, tb)          lane-dense output tile
    """
    w1v = w1[...]
    cd = w1v.dtype                      # compute dtype for MXU operands (bf16 or f32)
    x = x_ref[...].astype(cd)           # (tb, D)

    # Layer 1: contract over the feature dim (NT matmul, K=5) -> (HIDDEN, tb).
    # Folds the x transpose into the MXU; batch stays on lanes.
    h = lax.dot_general(w1v, x, (((1,), (1,)), ((), ())),
                        preferred_element_type=jnp.float32)
    h = jnp.maximum(h + b1[...], 0.0)

    # Layers 2-4: 64x64 matmuls, bf16 operands, f32 accumulate, f32 bias+ReLU.
    for w_ref, b_ref in ((w2, b2), (w3, b3), (w4, b4)):
        h = jnp.dot(w_ref[...], h.astype(cd), preferred_element_type=jnp.float32)
        h = jnp.maximum(h + b_ref[...], 0.0)

    # Final 64 -> 1 layer: VPU multiply + sublane (XLU) reduce instead of an
    # N=1 MXU matmul; keeps the output lane-dense and frees the MXU slot.
    out = jnp.sum(h * w5c[...], axis=0, keepdims=True) + b5[...]
    o_ref[...] = out.astype(o_ref.dtype)


def init_params(key, state_dim=STATE_DIM, action_dim=ACTION_DIM, hidden=HIDDEN):
    """Deterministic init; weights kept in PyTorch (out, in) convention."""
    dims = [(hidden, state_dim), (hidden, hidden), (hidden, hidden),
            (hidden, hidden), (action_dim, hidden)]
    params = []
    for i, (out_d, in_d) in enumerate(dims):
        kw, kb = jax.random.split(jax.random.fold_in(key, i))
        bound = 1.0 / jnp.sqrt(in_d)
        w = jax.random.uniform(kw, (out_d, in_d), jnp.float32, -bound, bound)
        b = jax.random.uniform(kb, (out_d,), jnp.float32, -bound, bound)
        params.append((w, b))
    return params


def prepack_params(params, compute_dtype=jnp.bfloat16):
    """One-time packing outside the jitted forward (no per-call transposes).

    w1..w4 are stored in `compute_dtype` (bf16 -> native MXU throughput);
    biases and the final 64->1 column stay f32 (VPU/epilogue path).
    """
    (w1, b1), (w2, b2), (w3, b3), (w4, b4), (w5, b5) = params
    cd = compute_dtype
    return (
        jnp.asarray(w1, cd), jnp.asarray(b1, jnp.float32)[:, None],
        jnp.asarray(w2, cd), jnp.asarray(b2, jnp.float32)[:, None],
        jnp.asarray(w3, cd), jnp.asarray(b3, jnp.float32)[:, None],
        jnp.asarray(w4, cd), jnp.asarray(b4, jnp.float32)[:, None],
        jnp.asarray(w5, jnp.float32).T,                 # (HIDDEN, 1) column, f32
        jnp.asarray(b5, jnp.float32).reshape(1, 1),
    )


def _choose_tile(batch, tb_max=2048):
    """128-multiple batch tile; >=2 grid steps (even when larger) so the
    'parallel' axis can shard / balance across v7x's two TensorCores."""
    b128 = ((batch + 127) // 128) * 128
    if b128 <= 128:
        return 128
    steps = max(2, pl.cdiv(b128, tb_max))
    if steps > 2 and steps % 2 == 1:
        steps += 1          # even step count balances the two TCs on v7x
    tb = ((pl.cdiv(b128, steps) + 127) // 128) * 128
    return max(tb, 128)


@functools.partial(jax.jit, static_argnames=("tb_max",))
def reward_net_5_forward(x, packed, tb_max=2048):
    B, D = x.shape
    tb = _choose_tile(B, tb_max)
    bp = pl.cdiv(B, tb) * tb  # padded batch, multiple of the (128-aligned) tile

    xp = x.astype(jnp.float32)
    if bp != B:  # cheap zero-pad of (B, 5); no transpose / extra layout pass
        xp = jnp.pad(xp, ((0, bp - B), (0, 0)))

    def const_spec(a):
        # Constant block index across the grid -> fetched once, not re-DMA'd.
        return pl.BlockSpec(a.shape, lambda i: (0, 0))

    in_specs = ([pl.BlockSpec((tb, D), lambda i: (i, 0))]       # x streamed over batch
                + [const_spec(a) for a in packed])
    out_spec = pl.BlockSpec((ACTION_DIM, tb), lambda i: (0, i))  # lane-dense output

    outT = pl.pallas_call(
        _mlp_kernel,
        out_shape=jax.ShapeDtypeStruct((ACTION_DIM, bp), x.dtype),
        grid_spec=pltpu.PrefetchScalarGridSpec(
            num_scalar_prefetch=0,
            grid=(bp // tb,),
            in_specs=in_specs,
            out_specs=out_spec,
        ),
        compiler_params=pltpu.CompilerParams(
            dimension_semantics=("parallel",),
            vmem_limit_bytes=32 * 1024 * 1024,
        ),
    )(xp, *packed)

    return outT.T[:B]  # (B, ACTION_DIM), padding stripped


def reward_net_5_reference(x, params):
    h = x
    for i, (w, b) in enumerate(params):
        h = h @ w.T + b
        if i < len(params) - 1:
            h = jnp.maximum(h, 0.0)
    return h


if __name__ == "__main__":
    key = jax.random.PRNGKey(0)
    kp, kx = jax.random.split(key)
    params = init_params(kp)
    packed_bf16 = prepack_params(params, jnp.bfloat16)   # perf path (MXU-native)
    packed_f32 = prepack_params(params, jnp.float32)     # full-precision validation path

    for i, B in enumerate((8, 300)):   # single-tile and multi-step/padded grids
        x = jax.random.normal(jax.random.fold_in(kx, i), (B, STATE_DIM), jnp.float32)
        ref = reward_net_5_reference(x, params)

        out_f32 = jax.block_until_ready(reward_net_5_forward(x, packed_f32))
        assert out_f32.shape == (B, ACTION_DIM)
        assert jnp.allclose(out_f32, ref, atol=1e-4, rtol=1e-4), f"f32 mismatch (B={B})"

        out_bf16 = jax.block_until_ready(reward_net_5_forward(x, packed_bf16))
        assert out_bf16.shape == (B, ACTION_DIM)
        assert jnp.allclose(out_bf16, ref, atol=2e-2, rtol=2e-2), f"bf16 mismatch (B={B})"

    print("KERNEL_OK")
</pallas_src>

<mosaic_0001>
module attributes {stable_mosaic.version = 11 : i64} {
  func.func @_mlp_kernel(%arg0: i32, %arg1: memref<128x5xf32, #tpu.memory_space<vmem>>, %arg2: memref<64x5xf32, #tpu.memory_space<vmem>>, %arg3: memref<64x1xf32, #tpu.memory_space<vmem>>, %arg4: memref<64x64xf32, #tpu.memory_space<vmem>>, %arg5: memref<64x1xf32, #tpu.memory_space<vmem>>, %arg6: memref<64x64xf32, #tpu.memory_space<vmem>>, %arg7: memref<64x1xf32, #tpu.memory_space<vmem>>, %arg8: memref<64x64xf32, #tpu.memory_space<vmem>>, %arg9: memref<64x1xf32, #tpu.memory_space<vmem>>, %arg10: memref<64x1xf32, #tpu.memory_space<vmem>>, %arg11: memref<1x1xf32, #tpu.memory_space<vmem>>, %arg12: memref<1x128xf32, #tpu.memory_space<vmem>>) attributes {dimension_semantics = [#tpu.dimension_semantics<parallel>], iteration_bounds = array<i64: 1>, scalar_prefetch = 0 : i64, scratch_operands = 0 : i64, tpu.core_type = #tpu.core_type<tc>, window_params = [{transform_indices = @transform_0, window_bounds = array<i64: 128, 5>}, {pipeline_mode = #tpu.pipeline_mode<synchronous>, transform_indices = @transform_1, window_bounds = array<i64: 64, 5>}, {pipeline_mode = #tpu.pipeline_mode<synchronous>, transform_indices = @transform_2, window_bounds = array<i64: 64, 1>}, {pipeline_mode = #tpu.pipeline_mode<synchronous>, transform_indices = @transform_3, window_bounds = array<i64: 64, 64>}, {pipeline_mode = #tpu.pipeline_mode<synchronous>, transform_indices = @transform_4, window_bounds = array<i64: 64, 1>}, {pipeline_mode = #tpu.pipeline_mode<synchronous>, transform_indices = @transform_5, window_bounds = array<i64: 64, 64>}, {pipeline_mode = #tpu.pipeline_mode<synchronous>, transform_indices = @transform_6, window_bounds = array<i64: 64, 1>}, {pipeline_mode = #tpu.pipeline_mode<synchronous>, transform_indices = @transform_7, window_bounds = array<i64: 64, 64>}, {pipeline_mode = #tpu.pipeline_mode<synchronous>, transform_indices = @transform_8, window_bounds = array<i64: 64, 1>}, {pipeline_mode = #tpu.pipeline_mode<synchronous>, transform_indices = @transform_9, window_bounds = array<i64: 64, 1>}, {pipeline_mode = #tpu.pipeline_mode<synchronous>, transform_indices = @transform_10, window_bounds = array<i64: 1, 1>}, {transform_indices = @transform_11, window_bounds = array<i64: 1, 128>}]} {
    %c0 = arith.constant 0 : index
    %c0_0 = arith.constant 0 : index
    %0 = vector.load %arg2[%c0, %c0_0] : memref<64x5xf32, #tpu.memory_space<vmem>>, vector<64x5xf32>
    %c0_1 = arith.constant 0 : index
    %c0_2 = arith.constant 0 : index
    %1 = vector.load %arg1[%c0_1, %c0_2] : memref<128x5xf32, #tpu.memory_space<vmem>>, vector<128x5xf32>
    %cst = arith.constant dense<0.000000e+00> : vector<64x128xf32>
    %2 = tpu.matmul %0, %1, %cst {dimension_numbers = #tpu.dot_dimension_numbers<[1], [1], [0], [0], [0, 0, 1, 0], [], []>} : vector<64x5xf32>, vector<128x5xf32>, vector<64x128xf32> -> vector<64x128xf32>
    %c0_3 = arith.constant 0 : index
    %c0_4 = arith.constant 0 : index
    %3 = vector.load %arg3[%c0_3, %c0_4] : memref<64x1xf32, #tpu.memory_space<vmem>>, vector<64x1xf32>
    %4 = vector.broadcast %3 : vector<64x1xf32> to vector<64x128xf32>
    %5 = arith.addf %2, %4 : vector<64x128xf32>
    %cst_5 = arith.constant 0.000000e+00 : f32
    %6 = vector.broadcast %cst_5 : f32 to vector<64x128xf32>
    %7 = arith.maximumf %5, %6 : vector<64x128xf32>
    %c0_6 = arith.constant 0 : index
    %c0_7 = arith.constant 0 : index
    %8 = vector.load %arg4[%c0_6, %c0_7] : memref<64x64xf32, #tpu.memory_space<vmem>>, vector<64x64xf32>
    %cst_8 = arith.constant dense<0.000000e+00> : vector<64x128xf32>
    %9 = tpu.matmul %8, %7, %cst_8 {dimension_numbers = #tpu.dot_dimension_numbers<[1], [0], [0], [1], [0, 0, 1, 1], [], []>} : vector<64x64xf32>, vector<64x128xf32>, vector<64x128xf32> -> vector<64x128xf32>
    %c0_9 = arith.constant 0 : index
    %c0_10 = arith.constant 0 : index
    %10 = vector.load %arg5[%c0_9, %c0_10] : memref<64x1xf32, #tpu.memory_space<vmem>>, vector<64x1xf32>
    %11 = vector.broadcast %10 : vector<64x1xf32> to vector<64x128xf32>
    %12 = arith.addf %9, %11 : vector<64x128xf32>
    %cst_11 = arith.constant 0.000000e+00 : f32
    %13 = vector.broadcast %cst_11 : f32 to vector<64x128xf32>
    %14 = arith.maximumf %12, %13 : vector<64x128xf32>
    %c0_12 = arith.constant 0 : index
    %c0_13 = arith.constant 0 : index
    %15 = vector.load %arg6[%c0_12, %c0_13] : memref<64x64xf32, #tpu.memory_space<vmem>>, vector<64x64xf32>
    %cst_14 = arith.constant dense<0.000000e+00> : vector<64x128xf32>
    %16 = tpu.matmul %15, %14, %cst_14 {dimension_numbers = #tpu.dot_dimension_numbers<[1], [0], [0], [1], [0, 0, 1, 1], [], []>} : vector<64x64xf32>, vector<64x128xf32>, vector<64x128xf32> -> vector<64x128xf32>
    %c0_15 = arith.constant 0 : index
    %c0_16 = arith.constant 0 : index
    %17 = vector.load %arg7[%c0_15, %c0_16] : memref<64x1xf32, #tpu.memory_space<vmem>>, vector<64x1xf32>
    %18 = vector.broadcast %17 : vector<64x1xf32> to vector<64x128xf32>
    %19 = arith.addf %16, %18 : vector<64x128xf32>
    %cst_17 = arith.constant 0.000000e+00 : f32
    %20 = vector.broadcast %cst_17 : f32 to vector<64x128xf32>
    %21 = arith.maximumf %19, %20 : vector<64x128xf32>
    %c0_18 = arith.constant 0 : index
    %c0_19 = arith.constant 0 : index
    %22 = vector.load %arg8[%c0_18, %c0_19] : memref<64x64xf32, #tpu.memory_space<vmem>>, vector<64x64xf32>
    %cst_20 = arith.constant dense<0.000000e+00> : vector<64x128xf32>
    %23 = tpu.matmul %22, %21, %cst_20 {dimension_numbers = #tpu.dot_dimension_numbers<[1], [0], [0], [1], [0, 0, 1, 1], [], []>} : vector<64x64xf32>, vector<64x128xf32>, vector<64x128xf32> -> vector<64x128xf32>
    %c0_21 = arith.constant 0 : index
    %c0_22 = arith.constant 0 : index
    %24 = vector.load %arg9[%c0_21, %c0_22] : memref<64x1xf32, #tpu.memory_space<vmem>>, vector<64x1xf32>
    %25 = vector.broadcast %24 : vector<64x1xf32> to vector<64x128xf32>
    %26 = arith.addf %23, %25 : vector<64x128xf32>
    %cst_23 = arith.constant 0.000000e+00 : f32
    %27 = vector.broadcast %cst_23 : f32 to vector<64x128xf32>
    %28 = arith.maximumf %26, %27 : vector<64x128xf32>
    %c0_24 = arith.constant 0 : index
    %c0_25 = arith.constant 0 : index
    %29 = vector.load %arg10[%c0_24, %c0_25] : memref<64x1xf32, #tpu.memory_space<vmem>>, vector<64x1xf32>
    %30 = vector.broadcast %29 : vector<64x1xf32> to vector<64x128xf32>
    %31 = arith.mulf %28, %30 : vector<64x128xf32>
    %cst_26 = arith.constant dense<0.000000e+00> : vector<128xf32>
    %32 = vector.multi_reduction <add>, %31, %cst_26 [0] : vector<64x128xf32> to vector<128xf32>
    %33 = vector.shape_cast %32 : vector<128xf32> to vector<1x128xf32>
    %c0_27 = arith.constant 0 : index
    %c0_28 = arith.constant 0 : index
    %34 = vector.load %arg11[%c0_27, %c0_28] : memref<1x1xf32, #tpu.memory_space<vmem>>, vector<1x1xf32>
    %35 = vector.broadcast %34 : vector<1x1xf32> to vector<1x128xf32>
    %36 = arith.addf %33, %35 : vector<1x128xf32>
    %c0_29 = arith.constant 0 : index
    %c0_30 = arith.constant 0 : index
    %37 = vector.load %arg12[%c0_29, %c0_30] : memref<1x128xf32, #tpu.memory_space<vmem>>, vector<1x128xf32>
    tpu.vector_store %arg12[%c0_29, %c0_30], %36 {strides = array<i32>} : memref<1x128xf32, #tpu.memory_space<vmem>>, vector<1x128xf32>,
    return
  }
  func.func @transform_0(%arg0: i32) -> (i32, i32) {
    %c0_i32 = arith.constant 0 : i32
    %c0_i32_0 = arith.constant 0 : i32
    return %arg0, %c0_i32 : i32, i32
  }
  func.func @transform_1(%arg0: i32) -> (i32, i32) {
    %c0_i32 = arith.constant 0 : i32
    %c0_i32_0 = arith.constant 0 : i32
    %c0_i32_1 = arith.constant 0 : i32
    return %c0_i32, %c0_i32_0 : i32, i32
  }
  func.func @transform_2(%arg0: i32) -> (i32, i32) {
    %c0_i32 = arith.constant 0 : i32
    %c0_i32_0 = arith.constant 0 : i32
    %c0_i32_1 = arith.constant 0 : i32
    return %c0_i32, %c0_i32_0 : i32, i32
  }
  func.func @transform_3(%arg0: i32) -> (i32, i32) {
    %c0_i32 = arith.constant 0 : i32
    %c0_i32_0 = arith.constant 0 : i32
    %c0_i32_1 = arith.constant 0 : i32
    return %c0_i32, %c0_i32_0 : i32, i32
  }
  func.func @transform_4(%arg0: i32) -> (i32, i32) {
    %c0_i32 = arith.constant 0 : i32
    %c0_i32_0 = arith.constant 0 : i32
    %c0_i32_1 = arith.constant 0 : i32
    return %c0_i32, %c0_i32_0 : i32, i32
  }
  func.func @transform_5(%arg0: i32) -> (i32, i32) {
    %c0_i32 = arith.constant 0 : i32
    %c0_i32_0 = arith.constant 0 : i32
    %c0_i32_1 = arith.constant 0 : i32
    return %c0_i32, %c0_i32_0 : i32, i32
  }
  func.func @transform_6(%arg0: i32) -> (i32, i32) {
    %c0_i32 = arith.constant 0 : i32
    %c0_i32_0 = arith.constant 0 : i32
    %c0_i32_1 = arith.constant 0 : i32
    return %c0_i32, %c0_i32_0 : i32, i32
  }
  func.func @transform_7(%arg0: i32) -> (i32, i32) {
    %c0_i32 = arith.constant 0 : i32
    %c0_i32_0 = arith.constant 0 : i32
    %c0_i32_1 = arith.constant 0 : i32
    return %c0_i32, %c0_i32_0 : i32, i32
  }
  func.func @transform_8(%arg0: i32) -> (i32, i32) {
    %c0_i32 = arith.constant 0 : i32
    %c0_i32_0 = arith.constant 0 : i32
    %c0_i32_1 = arith.constant 0 : i32
    return %c0_i32, %c0_i32_0 : i32, i32
  }
  func.func @transform_9(%arg0: i32) -> (i32, i32) {
    %c0_i32 = arith.constant 0 : i32
    %c0_i32_0 = arith.constant 0 : i32
    %c0_i32_1 = arith.constant 0 : i32
    return %c0_i32, %c0_i32_0 : i32, i32
  }
  func.func @transform_10(%arg0: i32) -> (i32, i32) {
    %c0_i32 = arith.constant 0 : i32
    %c0_i32_0 = arith.constant 0 : i32
    %c0_i32_1 = arith.constant 0 : i32
    return %c0_i32, %c0_i32_0 : i32, i32
  }
  func.func @transform_11(%arg0: i32) -> (i32, i32) {
    %c0_i32 = arith.constant 0 : i32
    %c0_i32_0 = arith.constant 0 : i32
    return %c0_i32, %arg0 : i32, i32
  }
}

</mosaic_0001>

<llo_original>
// kernel: reward_net_5_forward.1
$region0: #{reward_net_5_forward.1}
  #allocation0 [shape = 'u32[]', space=smem, size = 0x4, offset = 0x4, fixed_abs, tag = 'smem constant byte address 0x4 - core index']
  #allocation1 [shape = 'u32[144,128]{1,0:T(1,128)}', space=vmem, size = 0x12000, scoped, tag = 'internal scratch']
  #allocation2 [shape = 'f32[1,1]{1,0:T(1,128)S(1)}', space=vmem, size = 0x200, scoped, tag = 'scoped memory for reward_net_5_forward.1']
  %s0 = inlined_call_operand.vmem [shape: f32[128,5], index: 0, kind: input, shape index: {}]
  %s1 = inlined_call_operand.vmem [shape: f32[64,5], index: 1, kind: input, shape index: {}]
  %s2 = inlined_call_operand.vmem [shape: f32[64,1], index: 2, kind: input, shape index: {}]
  %s3 = inlined_call_operand.vmem [shape: f32[64,64], index: 3, kind: input, shape index: {}]
  %s4 = inlined_call_operand.vmem [shape: f32[64,1], index: 4, kind: input, shape index: {}]
  %s5 = inlined_call_operand.vmem [shape: f32[64,64], index: 5, kind: input, shape index: {}]
  %s6 = inlined_call_operand.vmem [shape: f32[64,1], index: 6, kind: input, shape index: {}]
  %s7 = inlined_call_operand.vmem [shape: f32[64,64], index: 7, kind: input, shape index: {}]
  %s8 = inlined_call_operand.vmem [shape: f32[64,1], index: 8, kind: input, shape index: {}]
  %s9 = inlined_call_operand.vmem [shape: f32[64,1], index: 9, kind: input, shape index: {}]
  %s10 = inlined_call_operand.<no memory space> [shape: f32[1,1], index: 10, kind: input, shape index: {}]
  %s11 = inlined_call_operand.vmem [shape: f32[1,128], index: 11, kind: output, shape index: {}]
  %s12 = sld [smem:[#allocation0]]
  $region54: #{reward_net_5_forward.1} parent=0
    _
  %s14 = ssub.s32 1, %s12
  %s15 = scalar_select 0, %s14, %s12
  %v16 = vstv %s10
  %17 = vst [vmem:[#allocation2] sm:$0x1] %v16
  // Predicated region
  $region2: #{reward_net_5_forward.1} parent=0 // pred_check
    _
  $region3: #{reward_net_5_forward.1} parent=0 // pred_check_branch
    %19 = sbr.rel (0) target = $region5
  $region4: #{reward_net_5_forward.1} parent=0 // pred_region
    _
  $region5: #{reward_net_5_forward.1} parent=0 // pred_fallthru
    _
  // Predicated region
  $region6: #{reward_net_5_forward.1} parent=0 // pred_check
    _
  $region7: #{reward_net_5_forward.1} parent=0 // pred_check_branch
    %21 = sbr.rel (0) target = $region9
  $region8: #{reward_net_5_forward.1} parent=0 // pred_region
    _
  $region9: #{reward_net_5_forward.1} parent=0 // pred_fallthru
    _
  // Predicated region
  $region10: #{reward_net_5_forward.1} parent=0 // pred_check
    _
  $region11: #{reward_net_5_forward.1} parent=0 // pred_check_branch
    %23 = sbr.rel (0) target = $region13
  $region12: #{reward_net_5_forward.1} parent=0 // pred_region
    _
  $region13: #{reward_net_5_forward.1} parent=0 // pred_fallthru
    _
  // Predicated region
  $region14: #{reward_net_5_forward.1} parent=0 // pred_check
    _
  $region15: #{reward_net_5_forward.1} parent=0 // pred_check_branch
    %25 = sbr.rel (0) target = $region17
  $region16: #{reward_net_5_forward.1} parent=0 // pred_region
    _
  $region17: #{reward_net_5_forward.1} parent=0 // pred_fallthru
    _
  // Predicated region
  $region18: #{reward_net_5_forward.1} parent=0 // pred_check
    _
  $region19: #{reward_net_5_forward.1} parent=0 // pred_check_branch
    %27 = sbr.rel (0) target = $region21
  $region20: #{reward_net_5_forward.1} parent=0 // pred_region
    _
  $region21: #{reward_net_5_forward.1} parent=0 // pred_fallthru
    _
  // Predicated region
  $region22: #{reward_net_5_forward.1} parent=0 // pred_check
    _
  $region23: #{reward_net_5_forward.1} parent=0 // pred_check_branch
    %29 = sbr.rel (0) target = $region25
  $region24: #{reward_net_5_forward.1} parent=0 // pred_region
    _
  $region25: #{reward_net_5_forward.1} parent=0 // pred_fallthru
    _
  // Predicated region
  $region26: #{reward_net_5_forward.1} parent=0 // pred_check
    _
  $region27: #{reward_net_5_forward.1} parent=0 // pred_check_branch
    %31 = sbr.rel (0) target = $region29
  $region28: #{reward_net_5_forward.1} parent=0 // pred_region
    _
  $region29: #{reward_net_5_forward.1} parent=0 // pred_fallthru
    _
  // Predicated region
  $region30: #{reward_net_5_forward.1} parent=0 // pred_check
    _
  $region31: #{reward_net_5_forward.1} parent=0 // pred_check_branch
    %33 = sbr.rel (0) target = $region33
  $region32: #{reward_net_5_forward.1} parent=0 // pred_region
    _
  $region33: #{reward_net_5_forward.1} parent=0 // pred_fallthru
    _
  // Predicated region
  $region34: #{reward_net_5_forward.1} parent=0 // pred_check
    _
  $region35: #{reward_net_5_forward.1} parent=0 // pred_check_branch
    %35 = sbr.rel (0) target = $region37
  $region36: #{reward_net_5_forward.1} parent=0 // pred_region
    _
  $region37: #{reward_net_5_forward.1} parent=0 // pred_fallthru
    _
  // Predicated region
  $region38: #{reward_net_5_forward.1} parent=0 // pred_check
    _
  $region39: #{reward_net_5_forward.1} parent=0 // pred_check_branch
    %37 = sbr.rel (0) target = $region41
  $region40: #{reward_net_5_forward.1} parent=0 // pred_region
    _
  $region41: #{reward_net_5_forward.1} parent=0 // pred_fallthru
    _
  // Predicated region
  $region42: #{reward_net_5_forward.1} parent=0 // pred_check
    _
  $region43: #{reward_net_5_forward.1} parent=0 // pred_check_branch
    %39 = sbr.rel (0) target = $region45
  $region44: #{reward_net_5_forward.1} parent=0 // pred_region
    _
  $region45: #{reward_net_5_forward.1} parent=0 // pred_fallthru
    _
  %v40 = vld [vmem:[%s1] sm:$0xff]
  %v41 = vld [vmem:[%s1 + $0x8] sm:$0xff]
  %v42 = vld [vmem:[%s1 + $0x10] sm:$0xff]
  %v43 = vld [vmem:[%s1 + $0x18] sm:$0xff]
  %v44 = vld [vmem:[%s1 + $0x20] sm:$0xff]
  %v45 = vld [vmem:[%s1 + $0x28] sm:$0xff]
  %v46 = vld [vmem:[%s1 + $0x30] sm:$0xff]
  %v47 = vld [vmem:[%s1 + $0x38] sm:$0xff]
  %v48 = vld [vmem:[%s0] sm:$0xff]
  %v49 = vld [vmem:[%s0 + $0x8] sm:$0xff]
  %v50 = vld [vmem:[%s0 + $0x10] sm:$0xff]
  %v51 = vld [vmem:[%s0 + $0x18] sm:$0xff]
  %v52 = vld [vmem:[%s0 + $0x20] sm:$0xff]
  %v53 = vld [vmem:[%s0 + $0x28] sm:$0xff]
  %v54 = vld [vmem:[%s0 + $0x30] sm:$0xff]
  %v55 = vld [vmem:[%s0 + $0x38] sm:$0xff]
  %v56 = vld [vmem:[%s0 + $0x40] sm:$0xff]
  %v57 = vld [vmem:[%s0 + $0x48] sm:$0xff]
  %v58 = vld [vmem:[%s0 + $0x50] sm:$0xff]
  %v59 = vld [vmem:[%s0 + $0x58] sm:$0xff]
  %v60 = vld [vmem:[%s0 + $0x60] sm:$0xff]
  %v61 = vld [vmem:[%s0 + $0x68] sm:$0xff]
  %v62 = vld [vmem:[%s0 + $0x70] sm:$0xff]
  %v63 = vld [vmem:[%s0 + $0x78] sm:$0xff]
  %v64 = vld [vmem:[%s2] sm:$0xff]
  %v65 = vld [vmem:[%s2 + $0x8] sm:$0xff]
  %v66 = vld [vmem:[%s2 + $0x10] sm:$0xff]
  %v67 = vld [vmem:[%s2 + $0x18] sm:$0xff]
  %v68 = vld [vmem:[%s2 + $0x20] sm:$0xff]
  %v69 = vld [vmem:[%s2 + $0x28] sm:$0xff]
  %v70 = vld [vmem:[%s2 + $0x30] sm:$0xff]
  %v71 = vld [vmem:[%s2 + $0x38] sm:$0xff]
  %73 = vset.pattern.permute.xlu0 0
  %74 = vperm.xlu0 %73, %v64
  %v75 = vpop.permute.xlu0 %74
  %78 = vset.pattern.permute.xlu0 0
  %79 = vperm.xlu0 %78, %v65
  %v80 = vpop.permute.xlu0 %79
  %83 = vset.pattern.permute.xlu0 0
  %84 = vperm.xlu0 %83, %v66
  %v85 = vpop.permute.xlu0 %84
  %88 = vset.pattern.permute.xlu0 0
  %89 = vperm.xlu0 %88, %v67
  %v90 = vpop.permute.xlu0 %89
  %93 = vset.pattern.permute.xlu0 0
  %94 = vperm.xlu0 %93, %v68
  %v95 = vpop.permute.xlu0 %94
  %98 = vset.pattern.permute.xlu0 0
  %99 = vperm.xlu0 %98, %v69
  %v100 = vpop.permute.xlu0 %99
  %103 = vset.pattern.permute.xlu0 0
  %104 = vperm.xlu0 %103, %v70
  %v105 = vpop.permute.xlu0 %104
  %108 = vset.pattern.permute.xlu0 0
  %109 = vperm.xlu0 %108, %v71
  %v110 = vpop.permute.xlu0 %109
  %vm112 = vcmask 39936
  %v114 = vsel %vm112, %v40, 0
  %v117 = vsel %vm112, %v41, 0
  %v120 = vsel %vm112, %v42, 0
  %v123 = vsel %vm112, %v43, 0
  %v126 = vsel %vm112, %v44, 0
  %v129 = vsel %vm112, %v45, 0
  %v132 = vsel %vm112, %v46, 0
  %v135 = vsel %vm112, %v47, 0
  %v138 = vsel %vm112, %v48, 0
  %v141 = vsel %vm112, %v49, 0
  %v144 = vsel %vm112, %v50, 0
  %v147 = vsel %vm112, %v51, 0
  %v150 = vsel %vm112, %v52, 0
  %v153 = vsel %vm112, %v53, 0
  %v156 = vsel %vm112, %v54, 0
  %v159 = vsel %vm112, %v55, 0
  %v162 = vsel %vm112, %v56, 0
  %v165 = vsel %vm112, %v57, 0
  %v168 = vsel %vm112, %v58, 0
  %v171 = vsel %vm112, %v59, 0
  %v174 = vsel %vm112, %v60, 0
  %v177 = vsel %vm112, %v61, 0
  %v180 = vsel %vm112, %v62, 0
  %v183 = vsel %vm112, %v63, 0
  %185 = vmatprep.subr.mxu0 0.0
  %186 = vmatpush1.xpose.msra.mxu0 %v138
  %187 = vmatprep.subr.mxu0 0.0
  %188 = vmatpush1.xpose.msra.mxu0 %v141
  %189 = vmatprep.subr.mxu0 0.0
  %190 = vmatpush1.xpose.msra.mxu0 %v144
  %191 = vmatprep.subr.mxu0 0.0
  %192 = vmatpush1.xpose.msra.mxu0 %v147
  %193 = vmatprep.subr.mxu0 0.0
  %194 = vmatpush1.xpose.msra.mxu0 %v150
  %195 = vmatprep.subr.mxu0 0.0
  %196 = vmatpush1.xpose.msra.mxu0 %v153
  %197 = vmatprep.subr.mxu0 0.0
  %198 = vmatpush1.xpose.msra.mxu0 %v156
  %199 = vmatprep.subr.mxu0 0.0
  %200 = vmatpush1.xpose.msra.mxu0 %v159
  %201 = vmatprep.subr.mxu0 0.0
  %202 = vmatpush1.xpose.msra.mxu0 %v162
  %203 = vmatprep.subr.mxu0 0.0
  %204 = vmatpush1.xpose.msra.mxu0 %v165
  %205 = vmatprep.subr.mxu0 0.0
  %206 = vmatpush1.xpose.msra.mxu0 %v168
  %207 = vmatprep.subr.mxu0 0.0
  %208 = vmatpush1.xpose.msra.mxu0 %v171
  %209 = vmatprep.subr.mxu0 0.0
  %210 = vmatpush1.xpose.msra.mxu0 %v174
  %211 = vmatprep.subr.mxu0 0.0
  %212 = vmatpush1.xpose.msra.mxu0 %v177
  %213 = vmatprep.subr.mxu0 0.0
  %214 = vmatpush1.xpose.msra.mxu0 %v180
  %215 = vmatprep.subr.mxu0 0.0
  %216 = vmatpush1.xpose.msra.mxu0 %v183
  %217 = vmatprep.subr.mxu0 0.0
  %218 = vmatpush1.xpose.msra.mxu0 0.0
  %219 = vmatprep.subr.mxu0 0.0
  %220 = vmatpush1.xpose.msra.mxu0 0.0
  %221 = vmatprep.subr.mxu0 0.0
  %222 = vmatpush1.xpose.msra.mxu0 0.0
  %223 = vmatprep.subr.mxu0 0.0
  %224 = vmatpush1.xpose.msra.mxu0 0.0
  %225 = vmatprep.subr.mxu0 0.0
  %226 = vmatpush1.xpose.msra.mxu0 0.0
  %227 = vmatprep.subr.mxu0 0.0
  %228 = vmatpush1.xpose.msra.mxu0 0.0
  %229 = vmatprep.subr.mxu0 0.0
  %230 = vmatpush1.xpose.msra.mxu0 0.0
  %231 = vmatprep.subr.mxu0 0.0
  %232 = vmatpush1.xpose.msra.mxu0 0.0
  %233 = vmatprep.subr.mxu0 0.0
  %234 = vmatpush1.xpose.msra.mxu0 0.0
  %235 = vmatprep.subr.mxu0 0.0
  %236 = vmatpush1.xpose.msra.mxu0 0.0
  %237 = vmatprep.subr.mxu0 0.0
  %238 = vmatpush1.xpose.msra.mxu0 0.0
  %239 = vmatprep.subr.mxu0 0.0
  %240 = vmatpush1.xpose.msra.mxu0 0.0
  %241 = vmatprep.subr.mxu0 0.0
  %242 = vmatpush1.xpose.msra.mxu0 0.0
  %243 = vmatprep.subr.mxu0 0.0
  %244 = vmatpush1.xpose.msra.mxu0 0.0
  %245 = vmatprep.subr.mxu0 0.0
  %246 = vmatpush1.xpose.msra.mxu0 0.0
  %247 = vmatprep.subr.mxu0 0.0
  %248 = vmatpush1.xpose.msra.mxu0 0.0
  %249 = vmatprep.mubr.f32.mxu0 0.0
  %250 = vmatmul.mubr.f32.gmra.mrb[0].mxu0 %v114
  %v251 = vpop.f32.mrb[0].mxu0
  %v252 = vadd.f32 %v75, %v251
  %v253 = vpop.f32.mrb[0].mxu0
  %254 = vmatprep.mubr.f32.mxu0 0.0
  %255 = vmatmul.mubr.f32.gmra.mrb[0].mxu0 %v117
  %v256 = vpop.f32.mrb[0].mxu0
  %v257 = vadd.f32 %v80, %v256
  %v258 = vpop.f32.mrb[0].mxu0
  %259 = vmatprep.mubr.f32.mxu0 0.0
  %260 = vmatmul.mubr.f32.gmra.mrb[0].mxu0 %v120
  %v261 = vpop.f32.mrb[0].mxu0
  %v262 = vadd.f32 %v85, %v261
  %v263 = vpop.f32.mrb[0].mxu0
  %264 = vmatprep.mubr.f32.mxu0 0.0
  %265 = vmatmul.mubr.f32.gmra.mrb[0].mxu0 %v123
  %v266 = vpop.f32.mrb[0].mxu0
  %v267 = vadd.f32 %v90, %v266
  %v268 = vpop.f32.mrb[0].mxu0
  %269 = vmatprep.mubr.f32.mxu0 0.0
  %270 = vmatmul.mubr.f32.gmra.mrb[0].mxu0 %v126
  %v271 = vpop.f32.mrb[0].mxu0
  %v272 = vadd.f32 %v95, %v271
  %v273 = vpop.f32.mrb[0].mxu0
  %274 = vmatprep.mubr.f32.mxu0 0.0
  %275 = vmatmul.mubr.f32.gmra.mrb[0].mxu0 %v129
  %v276 = vpop.f32.mrb[0].mxu0
  %v277 = vadd.f32 %v100, %v276
  %v278 = vpop.f32.mrb[0].mxu0
  %279 = vmatprep.mubr.f32.mxu0 0.0
  %280 = vmatmul.mubr.f32.gmra.mrb[0].mxu0 %v132
  %v281 = vpop.f32.mrb[0].mxu0
  %v282 = vadd.f32 %v105, %v281
  %v283 = vpop.f32.mrb[0].mxu0
  %284 = vmatprep.mubr.f32.mxu0 0.0
  %285 = vmatmul.mubr.f32.gmra.mrb[0].mxu0 %v135
  %v286 = vpop.f32.mrb[0].mxu0
  %v287 = vadd.f32 %v110, %v286
  %v288 = vpop.f32.mrb[0].mxu0
  %289 = vdwg.mxu0
  %v290 = vmax.f32 %v252, 0.0
  %v291 = vmax.f32 %v257, 0.0
  %v292 = vmax.f32 %v262, 0.0
  %v293 = vmax.f32 %v267, 0.0
  %v294 = vmax.f32 %v272, 0.0
  %v295 = vmax.f32 %v277, 0.0
  %v296 = vmax.f32 %v282, 0.0
  %v297 = vmax.f32 %v287, 0.0
  %v298 = vld [vmem:[%s3] sm:$0xff]
  %v299 = vld [vmem:[%s3 + $0x8] sm:$0xff]
  %v300 = vld [vmem:[%s3 + $0x10] sm:$0xff]
  %v301 = vld [vmem:[%s3 + $0x18] sm:$0xff]
  %v302 = vld [vmem:[%s3 + $0x20] sm:$0xff]
  %v303 = vld [vmem:[%s3 + $0x28] sm:$0xff]
  %v304 = vld [vmem:[%s3 + $0x30] sm:$0xff]
  %v305 = vld [vmem:[%s3 + $0x38] sm:$0xff]
  %v306 = vld [vmem:[%s4] sm:$0xff]
  %v307 = vld [vmem:[%s4 + $0x8] sm:$0xff]
  %v308 = vld [vmem:[%s4 + $0x10] sm:$0xff]
  %v309 = vld [vmem:[%s4 + $0x18] sm:$0xff]
  %v310 = vld [vmem:[%s4 + $0x20] sm:$0xff]
  %v311 = vld [vmem:[%s4 + $0x28] sm:$0xff]
  %v312 = vld [vmem:[%s4 + $0x30] sm:$0xff]
  %v313 = vld [vmem:[%s4 + $0x38] sm:$0xff]
  %315 = vset.pattern.permute.xlu0 0
  %316 = vperm.xlu0 %315, %v306
  %v317 = vpop.permute.xlu0 %316
  %320 = vset.pattern.permute.xlu0 0
  %321 = vperm.xlu0 %320, %v307
  %v322 = vpop.permute.xlu0 %321
  %325 = vset.pattern.permute.xlu0 0
  %326 = vperm.xlu0 %325, %v308
  %v327 = vpop.permute.xlu0 %326
  %330 = vset.pattern.permute.xlu0 0
  %331 = vperm.xlu0 %330, %v309
  %v332 = vpop.permute.xlu0 %331
  %335 = vset.pattern.permute.xlu0 0
  %336 = vperm.xlu0 %335, %v310
  %v337 = vpop.permute.xlu0 %336
  %340 = vset.pattern.permute.xlu0 0
  %341 = vperm.xlu0 %340, %v311
  %v342 = vpop.permute.xlu0 %341
  %345 = vset.pattern.permute.xlu0 0
  %346 = vperm.xlu0 %345, %v312
  %v347 = vpop.permute.xlu0 %346
  %350 = vset.pattern.permute.xlu0 0
  %351 = vperm.xlu0 %350, %v313
  %v352 = vpop.permute.xlu0 %351
  %vm354 = vcmask 523264
  %v356 = vsel %vm354, %v298, 0
  %v359 = vsel %vm354, %v299, 0
  %v362 = vsel %vm354, %v300, 0
  %v365 = vsel %vm354, %v301, 0
  %v368 = vsel %vm354, %v302, 0
  %v371 = vsel %vm354, %v303, 0
  %v374 = vsel %vm354, %v304, 0
  %v377 = vsel %vm354, %v305, 0
  %379 = vmatprep.subr.mxu0 0.0
  %380 = vmatpush1.msra.mxu0 %v290
  %381 = vmatprep.subr.mxu0 0.0
  %382 = vmatpush1.msra.mxu0 %v291
  %383 = vmatprep.subr.mxu0 0.0
  %384 = vmatpush1.msra.mxu0 %v292
  %385 = vmatprep.subr.mxu0 0.0
  %386 = vmatpush1.msra.mxu0 %v293
  %387 = vmatprep.subr.mxu0 0.0
  %388 = vmatpush1.msra.mxu0 %v294
  %389 = vmatprep.subr.mxu0 0.0
  %390 = vmatpush1.msra.mxu0 %v295
  %391 = vmatprep.subr.mxu0 0.0
  %392 = vmatpush1.msra.mxu0 %v296
  %393 = vmatprep.subr.mxu0 0.0
  %394 = vmatpush1.msra.mxu0 %v297
  %395 = vmatprep.subr.mxu0 0.0
  %396 = vmatpush1.msra.mxu0 0.0
  %397 = vmatprep.subr.mxu0 0.0
  %398 = vmatpush1.msra.mxu0 0.0
  %399 = vmatprep.subr.mxu0 0.0
  %400 = vmatpush1.msra.mxu0 0.0
  %401 = vmatprep.subr.mxu0 0.0
  %402 = vmatpush1.msra.mxu0 0.0
  %403 = vmatprep.subr.mxu0 0.0
  %404 = vmatpush1.msra.mxu0 0.0
  %405 = vmatprep.subr.mxu0 0.0
  %406 = vmatpush1.msra.mxu0 0.0
  %407 = vmatprep.subr.mxu0 0.0
  %408 = vmatpush1.msra.mxu0 0.0
  %409 = vmatprep.subr.mxu0 0.0
  %410 = vmatpush1.msra.mxu0 0.0
  %411 = vmatprep.subr.mxu0 0.0
  %412 = vmatpush1.msra.mxu0 0.0
  %413 = vmatprep.subr.mxu0 0.0
  %414 = vmatpush1.msra.mxu0 0.0
  %415 = vmatprep.subr.mxu0 0.0
  %416 = vmatpush1.msra.mxu0 0.0
  %417 = vmatprep.subr.mxu0 0.0
  %418 = vmatpush1.msra.mxu0 0.0
  %419 = vmatprep.subr.mxu0 0.0
  %420 = vmatpush1.msra.mxu0 0.0
  %421 = vmatprep.subr.mxu0 0.0
  %422 = vmatpush1.msra.mxu0 0.0
  %423 = vmatprep.subr.mxu0 0.0
  %424 = vmatpush1.msra.mxu0 0.0
  %425 = vmatprep.subr.mxu0 0.0
  %426 = vmatpush1.msra.mxu0 0.0
  %427 = vmatprep.subr.mxu0 0.0
  %428 = vmatpush1.msra.mxu0 0.0
  %429 = vmatprep.subr.mxu0 0.0
  %430 = vmatpush1.msra.mxu0 0.0
  %431 = vmatprep.subr.mxu0 0.0
  %432 = vmatpush1.msra.mxu0 0.0
  %433 = vmatprep.subr.mxu0 0.0
  %434 = vmatpush1.msra.mxu0 0.0
  %435 = vmatprep.subr.mxu0 0.0
  %436 = vmatpush1.msra.mxu0 0.0
  %437 = vmatprep.subr.mxu0 0.0
  %438 = vmatpush1.msra.mxu0 0.0
  %439 = vmatprep.subr.mxu0 0.0
  %440 = vmatpush1.msra.mxu0 0.0
  %441 = vmatprep.subr.mxu0 0.0
  %442 = vmatpush1.msra.mxu0 0.0
  %443 = vmatprep.mubr.f32.mxu0 0.0
  %444 = vmatmul.mubr.f32.gmra.mrb[0].mxu0 %v356
  %v445 = vpop.f32.mrb[0].mxu0
  %v446 = vadd.f32 %v317, %v445
  %v447 = vpop.f32.mrb[0].mxu0
  %448 = vmatprep.mubr.f32.mxu0 0.0
  %449 = vmatmul.mubr.f32.gmra.mrb[0].mxu0 %v359
  %v450 = vpop.f32.mrb[0].mxu0
  %v451 = vadd.f32 %v322, %v450
  %v452 = vpop.f32.mrb[0].mxu0
  %453 = vmatprep.mubr.f32.mxu0 0.0
  %454 = vmatmul.mubr.f32.gmra.mrb[0].mxu0 %v362
  %v455 = vpop.f32.mrb[0].mxu0
  %v456 = vadd.f32 %v327, %v455
  %v457 = vpop.f32.mrb[0].mxu0
  %458 = vmatprep.mubr.f32.mxu0 0.0
  %459 = vmatmul.mubr.f32.gmra.mrb[0].mxu0 %v365
  %v460 = vpop.f32.mrb[0].mxu0
  %v461 = vadd.f32 %v332, %v460
  %v462 = vpop.f32.mrb[0].mxu0
  %463 = vmatprep.mubr.f32.mxu0 0.0
  %464 = vmatmul.mubr.f32.gmra.mrb[0].mxu0 %v368
  %v465 = vpop.f32.mrb[0].mxu0
  %v466 = vadd.f32 %v337, %v465
  %v467 = vpop.f32.mrb[0].mxu0
  %468 = vmatprep.mubr.f32.mxu0 0.0
  %469 = vmatmul.mubr.f32.gmra.mrb[0].mxu0 %v371
  %v470 = vpop.f32.mrb[0].mxu0
  %v471 = vadd.f32 %v342, %v470
  %v472 = vpop.f32.mrb[0].mxu0
  %473 = vmatprep.mubr.f32.mxu0 0.0
  %474 = vmatmul.mubr.f32.gmra.mrb[0].mxu0 %v374
  %v475 = vpop.f32.mrb[0].mxu0
  %v476 = vadd.f32 %v347, %v475
  %v477 = vpop.f32.mrb[0].mxu0
  %478 = vmatprep.mubr.f32.mxu0 0.0
  %479 = vmatmul.mubr.f32.gmra.mrb[0].mxu0 %v377
  %v480 = vpop.f32.mrb[0].mxu0
  %v481 = vadd.f32 %v352, %v480
  %v482 = vpop.f32.mrb[0].mxu0
  %483 = vdwg.mxu0
  %v484 = vmax.f32 %v446, 0.0
  %v485 = vmax.f32 %v451, 0.0
  %v486 = vmax.f32 %v456, 0.0
  %v487 = vmax.f32 %v461, 0.0
  %v488 = vmax.f32 %v466, 0.0
  %v489 = vmax.f32 %v471, 0.0
  %v490 = vmax.f32 %v476, 0.0
  %v491 = vmax.f32 %v481, 0.0
  %v492 = vld [vmem:[%s5] sm:$0xff]
  %v493 = vld [vmem:[%s5 + $0x8] sm:$0xff]
  %v494 = vld [vmem:[%s5 + $0x10] sm:$0xff]
  %v495 = vld [vmem:[%s5 + $0x18] sm:$0xff]
  %v496 = vld [vmem:[%s5 + $0x20] sm:$0xff]
  %v497 = vld [vmem:[%s5 + $0x28] sm:$0xff]
  %v498 = vld [vmem:[%s5 + $0x30] sm:$0xff]
  %v499 = vld [vmem:[%s5 + $0x38] sm:$0xff]
  %v500 = vld [vmem:[%s6] sm:$0xff]
  %v501 = vld [vmem:[%s6 + $0x8] sm:$0xff]
  %v502 = vld [vmem:[%s6 + $0x10] sm:$0xff]
  %v503 = vld [vmem:[%s6 + $0x18] sm:$0xff]
  %v504 = vld [vmem:[%s6 + $0x20] sm:$0xff]
  %v505 = vld [vmem:[%s6 + $0x28] sm:$0xff]
  %v506 = vld [vmem:[%s6 + $0x30] sm:$0xff]
  %v507 = vld [vmem:[%s6 + $0x38] sm:$0xff]
  %509 = vset.pattern.permute.xlu0 0
  %510 = vperm.xlu0 %509, %v500
  %v511 = vpop.permute.xlu0 %510
  %514 = vset.pattern.permute.xlu0 0
  %515 = vperm.xlu0 %514, %v501
  %v516 = vpop.permute.xlu0 %515
  %519 = vset.pattern.permute.xlu0 0
  %520 = vperm.xlu0 %519, %v502
  %v521 = vpop.permute.xlu0 %520
  %524 = vset.pattern.permute.xlu0 0
  %525 = vperm.xlu0 %524, %v503
  %v526 = vpop.permute.xlu0 %525
  %529 = vset.pattern.permute.xlu0 0
  %530 = vperm.xlu0 %529, %v504
  %v531 = vpop.permute.xlu0 %530
  %534 = vset.pattern.permute.xlu0 0
  %535 = vperm.xlu0 %534, %v505
  %v536 = vpop.permute.xlu0 %535
  %539 = vset.pattern.permute.xlu0 0
  %540 = vperm.xlu0 %539, %v506
  %v541 = vpop.permute.xlu0 %540
  %544 = vset.pattern.permute.xlu0 0
  %545 = vperm.xlu0 %544, %v507
  %v546 = vpop.permute.xlu0 %545
  %v549 = vsel %vm354, %v492, 0
  %v552 = vsel %vm354, %v493, 0
  %v555 = vsel %vm354, %v494, 0
  %v558 = vsel %vm354, %v495, 0
  %v561 = vsel %vm354, %v496, 0
  %v564 = vsel %vm354, %v497, 0
  %v567 = vsel %vm354, %v498, 0
  %v570 = vsel %vm354, %v499, 0
  %572 = vmatprep.subr.mxu0 0.0
  %573 = vmatpush1.msra.mxu0 %v484
  %574 = vmatprep.subr.mxu0 0.0
  %575 = vmatpush1.msra.mxu0 %v485
  %576 = vmatprep.subr.mxu0 0.0
  %577 = vmatpush1.msra.mxu0 %v486
  %578 = vmatprep.subr.mxu0 0.0
  %579 = vmatpush1.msra.mxu0 %v487
  %580 = vmatprep.subr.mxu0 0.0
  %581 = vmatpush1.msra.mxu0 %v488
  %582 = vmatprep.subr.mxu0 0.0
  %583 = vmatpush1.msra.mxu0 %v489
  %584 = vmatprep.subr.mxu0 0.0
  %585 = vmatpush1.msra.mxu0 %v490
  %586 = vmatprep.subr.mxu0 0.0
  %587 = vmatpush1.msra.mxu0 %v491
  %588 = vmatprep.subr.mxu0 0.0
  %589 = vmatpush1.msra.mxu0 0.0
  %590 = vmatprep.subr.mxu0 0.0
  %591 = vmatpush1.msra.mxu0 0.0
  %592 = vmatprep.subr.mxu0 0.0
  %593 = vmatpush1.msra.mxu0 0.0
  %594 = vmatprep.subr.mxu0 0.0
  %595 = vmatpush1.msra.mxu0 0.0
  %596 = vmatprep.subr.mxu0 0.0
  %597 = vmatpush1.msra.mxu0 0.0
  %598 = vmatprep.subr.mxu0 0.0
  %599 = vmatpush1.msra.mxu0 0.0
  %600 = vmatprep.subr.mxu0 0.0
  %601 = vmatpush1.msra.mxu0 0.0
  %602 = vmatprep.subr.mxu0 0.0
  %603 = vmatpush1.msra.mxu0 0.0
  %604 = vmatprep.subr.mxu0 0.0
  %605 = vmatpush1.msra.mxu0 0.0
  %606 = vmatprep.subr.mxu0 0.0
  %607 = vmatpush1.msra.mxu0 0.0
  %608 = vmatprep.subr.mxu0 0.0
  %609 = vmatpush1.msra.mxu0 0.0
  %610 = vmatprep.subr.mxu0 0.0
  %611 = vmatpush1.msra.mxu0 0.0
  %612 = vmatprep.subr.mxu0 0.0
  %613 = vmatpush1.msra.mxu0 0.0
  %614 = vmatprep.subr.mxu0 0.0
  %615 = vmatpush1.msra.mxu0 0.0
  %616 = vmatprep.subr.mxu0 0.0
  %617 = vmatpush1.msra.mxu0 0.0
  %618 = vmatprep.subr.mxu0 0.0
  %619 = vmatpush1.msra.mxu0 0.0
  %620 = vmatprep.subr.mxu0 0.0
  %621 = vmatpush1.msra.mxu0 0.0
  %622 = vmatprep.subr.mxu0 0.0
  %623 = vmatpush1.msra.mxu0 0.0
  %624 = vmatprep.subr.mxu0 0.0
  %625 = vmatpush1.msra.mxu0 0.0
  %626 = vmatprep.subr.mxu0 0.0
  %627 = vmatpush1.msra.mxu0 0.0
  %628 = vmatprep.subr.mxu0 0.0
  %629 = vmatpush1.msra.mxu0 0.0
  %630 = vmatprep.subr.mxu0 0.0
  %631 = vmatpush1.msra.mxu0 0.0
  %632 = vmatprep.subr.mxu0 0.0
  %633 = vmatpush1.msra.mxu0 0.0
  %634 = vmatprep.subr.mxu0 0.0
  %635 = vmatpush1.msra.mxu0 0.0
  %636 = vmatprep.mubr.f32.mxu0 0.0
  %637 = vmatmul.mubr.f32.gmra.mrb[0].mxu0 %v549
  %v638 = vpop.f32.mrb[0].mxu0
  %v639 = vadd.f32 %v511, %v638
  %v640 = vpop.f32.mrb[0].mxu0
  %641 = vmatprep.mubr.f32.mxu0 0.0
  %642 = vmatmul.mubr.f32.gmra.mrb[0].mxu0 %v552
  %v643 = vpop.f32.mrb[0].mxu0
  %v644 = vadd.f32 %v516, %v643
  %v645 = vpop.f32.mrb[0].mxu0
  %646 = vmatprep.mubr.f32.mxu0 0.0
  %647 = vmatmul.mubr.f32.gmra.mrb[0].mxu0 %v555
  %v648 = vpop.f32.mrb[0].mxu0
  %v649 = vadd.f32 %v521, %v648
  %v650 = vpop.f32.mrb[0].mxu0
  %651 = vmatprep.mubr.f32.mxu0 0.0
  %652 = vmatmul.mubr.f32.gmra.mrb[0].mxu0 %v558
  %v653 = vpop.f32.mrb[0].mxu0
  %v654 = vadd.f32 %v526, %v653
  %v655 = vpop.f32.mrb[0].mxu0
  %656 = vmatprep.mubr.f32.mxu0 0.0
  %657 = vmatmul.mubr.f32.gmra.mrb[0].mxu0 %v561
  %v658 = vpop.f32.mrb[0].mxu0
  %v659 = vadd.f32 %v531, %v658
  %v660 = vpop.f32.mrb[0].mxu0
  %661 = vmatprep.mubr.f32.mxu0 0.0
  %662 = vmatmul.mubr.f32.gmra.mrb[0].mxu0 %v564
  %v663 = vpop.f32.mrb[0].mxu0
  %v664 = vadd.f32 %v536, %v663
  %v665 = vpop.f32.mrb[0].mxu0
  %666 = vmatprep.mubr.f32.mxu0 0.0
  %667 = vmatmul.mubr.f32.gmra.mrb[0].mxu0 %v567
  %v668 = vpop.f32.mrb[0].mxu0
  %v669 = vadd.f32 %v541, %v668
  %v670 = vpop.f32.mrb[0].mxu0
  %671 = vmatprep.mubr.f32.mxu0 0.0
  %672 = vmatmul.mubr.f32.gmra.mrb[0].mxu0 %v570
  %v673 = vpop.f32.mrb[0].mxu0
  %v674 = vadd.f32 %v546, %v673
  %v675 = vpop.f32.mrb[0].mxu0
  %676 = vdwg.mxu0
  %v677 = vmax.f32 %v639, 0.0
  %v678 = vmax.f32 %v644, 0.0
  %v679 = vmax.f32 %v649, 0.0
  %v680 = vmax.f32 %v654, 0.0
  %v681 = vmax.f32 %v659, 0.0
  %v682 = vmax.f32 %v664, 0.0
  %v683 = vmax.f32 %v669, 0.0
  %v684 = vmax.f32 %v674, 0.0
  %v685 = vld [vmem:[%s7] sm:$0xff]
  %v686 = vld [vmem:[%s7 + $0x8] sm:$0xff]
  %v687 = vld [vmem:[%s7 + $0x10] sm:$0xff]
  %v688 = vld [vmem:[%s7 + $0x18] sm:$0xff]
  %v689 = vld [vmem:[%s7 + $0x20] sm:$0xff]
  %v690 = vld [vmem:[%s7 + $0x28] sm:$0xff]
  %v691 = vld [vmem:[%s7 + $0x30] sm:$0xff]
  %v692 = vld [vmem:[%s7 + $0x38] sm:$0xff]
  %v693 = vld [vmem:[%s8] sm:$0xff]
  %v694 = vld [vmem:[%s8 + $0x8] sm:$0xff]
  %v695 = vld [vmem:[%s8 + $0x10] sm:$0xff]
  %v696 = vld [vmem:[%s8 + $0x18] sm:$0xff]
  %v697 = vld [vmem:[%s8 + $0x20] sm:$0xff]
  %v698 = vld [vmem:[%s8 + $0x28] sm:$0xff]
  %v699 = vld [vmem:[%s8 + $0x30] sm:$0xff]
  %v700 = vld [vmem:[%s8 + $0x38] sm:$0xff]
  %702 = vset.pattern.permute.xlu0 0
  %703 = vperm.xlu0 %702, %v693
  %v704 = vpop.permute.xlu0 %703
  %707 = vset.pattern.permute.xlu0 0
  %708 = vperm.xlu0 %707, %v694
  %v709 = vpop.permute.xlu0 %708
  %712 = vset.pattern.permute.xlu0 0
  %713 = vperm.xlu0 %712, %v695
  %v714 = vpop.permute.xlu0 %713
  %717 = vset.pattern.permute.xlu0 0
  %718 = vperm.xlu0 %717, %v696
  %v719 = vpop.permute.xlu0 %718
  %722 = vset.pattern.permute.xlu0 0
  %723 = vperm.xlu0 %722, %v697
  %v724 = vpop.permute.xlu0 %723
  %727 = vset.pattern.permute.xlu0 0
  %728 = vperm.xlu0 %727, %v698
  %v729 = vpop.permute.xlu0 %728
  %732 = vset.pattern.permute.xlu0 0
  %733 = vperm.xlu0 %732, %v699
  %v734 = vpop.permute.xlu0 %733
  %737 = vset.pattern.permute.xlu0 0
  %738 = vperm.xlu0 %737, %v700
  %v739 = vpop.permute.xlu0 %738
  %v742 = vsel %vm354, %v685, 0
  %v745 = vsel %vm354, %v686, 0
  %v748 = vsel %vm354, %v687, 0
  %v751 = vsel %vm354, %v688, 0
  %v754 = vsel %vm354, %v689, 0
  %v757 = vsel %vm354, %v690, 0
  %v760 = vsel %vm354, %v691, 0
  %v763 = vsel %vm354, %v692, 0
  %765 = vmatprep.subr.mxu0 0.0
  %766 = vmatpush1.msra.mxu0 %v677
  %767 = vmatprep.subr.mxu0 0.0
  %768 = vmatpush1.msra.mxu0 %v678
  %769 = vmatprep.subr.mxu0 0.0
  %770 = vmatpush1.msra.mxu0 %v679
  %771 = vmatprep.subr.mxu0 0.0
  %772 = vmatpush1.msra.mxu0 %v680
  %773 = vmatprep.subr.mxu0 0.0
  %774 = vmatpush1.msra.mxu0 %v681
  %775 = vmatprep.subr.mxu0 0.0
  %776 = vmatpush1.msra.mxu0 %v682
  %777 = vmatprep.subr.mxu0 0.0
  %778 = vmatpush1.msra.mxu0 %v683
  %779 = vmatprep.subr.mxu0 0.0
  %780 = vmatpush1.msra.mxu0 %v684
  %781 = vmatprep.subr.mxu0 0.0
  %782 = vmatpush1.msra.mxu0 0.0
  %783 = vmatprep.subr.mxu0 0.0
  %784 = vmatpush1.msra.mxu0 0.0
  %785 = vmatprep.subr.mxu0 0.0
  %786 = vmatpush1.msra.mxu0 0.0
  %787 = vmatprep.subr.mxu0 0.0
  %788 = vmatpush1.msra.mxu0 0.0
  %789 = vmatprep.subr.mxu0 0.0
  %790 = vmatpush1.msra.mxu0 0.0
  %791 = vmatprep.subr.mxu0 0.0
  %792 = vmatpush1.msra.mxu0 0.0
  %793 = vmatprep.subr.mxu0 0.0
  %794 = vmatpush1.msra.mxu0 0.0
  %795 = vmatprep.subr.mxu0 0.0
  %796 = vmatpush1.msra.mxu0 0.0
  %797 = vmatprep.subr.mxu0 0.0
  %798 = vmatpush1.msra.mxu0 0.0
  %799 = vmatprep.subr.mxu0 0.0
  %800 = vmatpush1.msra.mxu0 0.0
  %801 = vmatprep.subr.mxu0 0.0
  %802 = vmatpush1.msra.mxu0 0.0
  %803 = vmatprep.subr.mxu0 0.0
  %804 = vmatpush1.msra.mxu0 0.0
  %805 = vmatprep.subr.mxu0 0.0
  %806 = vmatpush1.msra.mxu0 0.0
  %807 = vmatprep.subr.mxu0 0.0
  %808 = vmatpush1.msra.mxu0 0.0
  %809 = vmatprep.subr.mxu0 0.0
  %810 = vmatpush1.msra.mxu0 0.0
  %811 = vmatprep.subr.mxu0 0.0
  %812 = vmatpush1.msra.mxu0 0.0
  %813 = vmatprep.subr.mxu0 0.0
  %814 = vmatpush1.msra.mxu0 0.0
  %815 = vmatprep.subr.mxu0 0.0
  %816 = vmatpush1.msra.mxu0 0.0
  %817 = vmatprep.subr.mxu0 0.0
  %818 = vmatpush1.msra.mxu0 0.0
  %819 = vmatprep.subr.mxu0 0.0
  %820 = vmatpush1.msra.mxu0 0.0
  %821 = vmatprep.subr.mxu0 0.0
  %822 = vmatpush1.msra.mxu0 0.0
  %823 = vmatprep.subr.mxu0 0.0
  %824 = vmatpush1.msra.mxu0 0.0
  %825 = vmatprep.subr.mxu0 0.0
  %826 = vmatpush1.msra.mxu0 0.0
  %827 = vmatprep.subr.mxu0 0.0
  %828 = vmatpush1.msra.mxu0 0.0
  %829 = vmatprep.mubr.f32.mxu0 0.0
  %830 = vmatmul.mubr.f32.gmra.mrb[0].mxu0 %v742
  %v831 = vpop.f32.mrb[0].mxu0
  %v832 = vadd.f32 %v704, %v831
  %v833 = vpop.f32.mrb[0].mxu0
  %834 = vmatprep.mubr.f32.mxu0 0.0
  %835 = vmatmul.mubr.f32.gmra.mrb[0].mxu0 %v745
  %v836 = vpop.f32.mrb[0].mxu0
  %v837 = vadd.f32 %v709, %v836
  %v838 = vpop.f32.mrb[0].mxu0
  %839 = vmatprep.mubr.f32.mxu0 0.0
  %840 = vmatmul.mubr.f32.gmra.mrb[0].mxu0 %v748
  %v841 = vpop.f32.mrb[0].mxu0
  %v842 = vadd.f32 %v714, %v841
  %v843 = vpop.f32.mrb[0].mxu0
  %844 = vmatprep.mubr.f32.mxu0 0.0
  %845 = vmatmul.mubr.f32.gmra.mrb[0].mxu0 %v751
  %v846 = vpop.f32.mrb[0].mxu0
  %v847 = vadd.f32 %v719, %v846
  %v848 = vpop.f32.mrb[0].mxu0
  %849 = vmatprep.mubr.f32.mxu0 0.0
  %850 = vmatmul.mubr.f32.gmra.mrb[0].mxu0 %v754
  %v851 = vpop.f32.mrb[0].mxu0
  %v852 = vadd.f32 %v724, %v851
  %v853 = vpop.f32.mrb[0].mxu0
  %854 = vmatprep.mubr.f32.mxu0 0.0
  %855 = vmatmul.mubr.f32.gmra.mrb[0].mxu0 %v757
  %v856 = vpop.f32.mrb[0].mxu0
  %v857 = vadd.f32 %v729, %v856
  %v858 = vpop.f32.mrb[0].mxu0
  %859 = vmatprep.mubr.f32.mxu0 0.0
  %860 = vmatmul.mubr.f32.gmra.mrb[0].mxu0 %v760
  %v861 = vpop.f32.mrb[0].mxu0
  %v862 = vadd.f32 %v734, %v861
  %v863 = vpop.f32.mrb[0].mxu0
  %864 = vmatprep.mubr.f32.mxu0 0.0
  %865 = vmatmul.mubr.f32.gmra.mrb[0].mxu0 %v763
  %v866 = vpop.f32.mrb[0].mxu0
  %v867 = vadd.f32 %v739, %v866
  %v868 = vpop.f32.mrb[0].mxu0
  %869 = vdwg.mxu0
  %v870 = vmax.f32 %v832, 0.0
  %v871 = vmax.f32 %v837, 0.0
  %v872 = vmax.f32 %v842, 0.0
  %v873 = vmax.f32 %v847, 0.0
  %v874 = vmax.f32 %v852, 0.0
  %v875 = vmax.f32 %v857, 0.0
  %v876 = vmax.f32 %v862, 0.0
  %v877 = vmax.f32 %v867, 0.0
  %v878 = vld [vmem:[%s9] sm:$0xff]
  %v879 = vld [vmem:[%s9 + $0x8] sm:$0xff]
  %v880 = vld [vmem:[%s9 + $0x10] sm:$0xff]
  %v881 = vld [vmem:[%s9 + $0x18] sm:$0xff]
  %v882 = vld [vmem:[%s9 + $0x20] sm:$0xff]
  %v883 = vld [vmem:[%s9 + $0x28] sm:$0xff]
  %v884 = vld [vmem:[%s9 + $0x30] sm:$0xff]
  %v885 = vld [vmem:[%s9 + $0x38] sm:$0xff]
  %887 = vset.pattern.permute.xlu0 0
  %888 = vperm.xlu0 %887, %v878
  %v889 = vpop.permute.xlu0 %888
  %892 = vset.pattern.permute.xlu0 0
  %893 = vperm.xlu0 %892, %v879
  %v894 = vpop.permute.xlu0 %893
  %897 = vset.pattern.permute.xlu0 0
  %898 = vperm.xlu0 %897, %v880
  %v899 = vpop.permute.xlu0 %898
  %902 = vset.pattern.permute.xlu0 0
  %903 = vperm.xlu0 %902, %v881
  %v904 = vpop.permute.xlu0 %903
  %907 = vset.pattern.permute.xlu0 0
  %908 = vperm.xlu0 %907, %v882
  %v909 = vpop.permute.xlu0 %908
  %912 = vset.pattern.permute.xlu0 0
  %913 = vperm.xlu0 %912, %v883
  %v914 = vpop.permute.xlu0 %913
  %917 = vset.pattern.permute.xlu0 0
  %918 = vperm.xlu0 %917, %v884
  %v919 = vpop.permute.xlu0 %918
  %922 = vset.pattern.permute.xlu0 0
  %923 = vperm.xlu0 %922, %v885
  %v924 = vpop.permute.xlu0 %923
  %v926 = vmul.f32 %v870, %v889
  %v927 = vmul.f32 %v871, %v894
  %v928 = vmul.f32 %v872, %v899
  %v929 = vmul.f32 %v873, %v904
  %v930 = vmul.f32 %v874, %v909
  %v931 = vmul.f32 %v875, %v914
  %v932 = vmul.f32 %v876, %v919
  %v933 = vmul.f32 %v877, %v924
  %v934 = vadd.f32 %v926, %v927
  %v935 = vadd.f32 %v934, %v928
  %v936 = vadd.f32 %v935, %v929
  %v937 = vadd.f32 %v936, %v930
  %v938 = vadd.f32 %v937, %v931
  %v939 = vadd.f32 %v938, %v932
  %v940 = vadd.f32 %v939, %v933
  %v941 = vrot.slane %v940, 4
  %v942 = vadd.f32 %v940, %v941
  %v943 = vrot.slane %v942, 2
  %v944 = vadd.f32 %v942, %v943
  %v945 = vrot.slane %v944, 1
  %v946 = vadd.f32 %v944, %v945
  %v947 = vld [vmem:[#allocation2] sm:$0x1]
  %949 = vset.pattern.permute.xlu0 0
  %950 = vperm.xlu0 %949, %v947
  %v951 = vpop.permute.xlu0 %950
  %v953 = vlaneseq
  %v954 = vshrl.u32 %v953, 7
  %v955 = vsub.s32 0, %v954
  %v956 = vrot.slane %v951, %v955
  %v957 = vadd.f32 %v946, %v956
  %958 = vst [vmem:[%s11] sm:$0x1] %v957
  // Predicated region
  $region46: #{reward_net_5_forward.1} parent=0 // pred_check
    _
  $region47: #{reward_net_5_forward.1} parent=0 // pred_check_branch
    %960 = sbr.rel (0) target = $region49
  $region48: #{reward_net_5_forward.1} parent=0 // pred_region
    _
  $region49: #{reward_net_5_forward.1} parent=0 // pred_fallthru
    _
  // Predicated region
  $region50: #{reward_net_5_forward.1} parent=0 // pred_check
    _
  $region51: #{reward_net_5_forward.1} parent=0 // pred_check_branch
    %962 = sbr.rel (0) target = $region53
  $region52: #{reward_net_5_forward.1} parent=0 // pred_region
    _
  $region53: #{reward_net_5_forward.1} parent=0 // pred_fallthru
    _

</llo_original>
